<compile_context>
chip_gen: v7x
topology: tpu7x:2x2x1
jax: 0.10.0
libtpu: 0.0.40
codegen_flags: <defaults>
</compile_context>

<pallas_src>
import functools
import math

import jax
import jax.numpy as jnp
from jax import lax
from jax.experimental import pallas as pl
from jax.experimental.pallas import tpu as pltpu


def _cldice_partial_kernel(p_ref, t_ref, out_ref, *, H, W, k, rows_per_img, strip_rows):
    """One row-block: soft-skeleton terms + per-block column partial sums.

    p_ref/t_ref: (Rb, k*W) slab tile, k image rows packed along lanes.
    out_ref:     (1, 8, k*W); row j holds column-sums of quantity j:
                 [p, t, p*t, ps, ts, ps*ts, 0, 0].
    """
    Rb, kW = p_ref.shape
    S = strip_rows
    n_strips = Rb // S
    f32 = jnp.float32
    neg = f32(-jnp.inf)
    pos = f32(jnp.inf)

    # ---- masks: built once per grid step; strips are image-aligned so the same
    #      boundary pattern repeats in every strip ------------------------------
    col = lax.broadcasted_iota(jnp.int32, (S, kW), 1)
    row = lax.broadcasted_iota(jnp.int32, (S, kW), 0)
    col_in_img = col % W
    m_lf = col_in_img > 0
    m_rt = col_in_img < (W - 1)
    if H > 1:
        row_in_img = row % rows_per_img
        # image row 0  <=> first packed row-group of the first slab row of the image
        m_up = jnp.logical_not(jnp.logical_and(row_in_img == 0, col < W))
        # image row H-1 <=> last packed row-group of the last slab row of the image
        m_dn = jnp.logical_not(
            jnp.logical_and(row_in_img == rows_per_img - 1, col >= kW - W))

    def _roll(x, shift, axis):
        n = x.shape[axis]
        s = shift % n
        return x if s == 0 else pltpu.roll(x, shift=s, axis=axis)

    # Neighbor one image-row below/above == shift of the row-major flat view by +-W.
    def shift_down(x):
        if k > 1:
            a = _roll(x, kW - W, 1)          # a[i,c] = x[i, (c+W) % kW]
            b = _roll(a, S - 1, 0)           # b[i,c] = x[i+1, (c+W) % kW]
            return jnp.where(col < kW - W, a, b)
        return _roll(x, S - 1, 0)            # x[i+1, c]

    def shift_up(x):
        if k > 1:
            a = _roll(x, W, 1)               # a[i,c] = x[i, (c-W) % kW]
            b = _roll(a, 1, 0)               # b[i,c] = x[i-1, (c-W) % kW]
            return jnp.where(col >= W, a, b)
        return _roll(x, 1, 0)                # x[i-1, c]

    def pool_terms(x):
        """maxpool3x3(x) + minpool3x3(x), separable (3x1 then 1x3), shifts shared."""
        vmax, vmin = x, x
        if H > 1:
            dn = shift_down(x)
            up = shift_up(x)
            vmax = jnp.maximum(x, jnp.maximum(jnp.where(m_dn, dn, neg),
                                              jnp.where(m_up, up, neg)))
            vmin = jnp.minimum(x, jnp.minimum(jnp.where(m_dn, dn, pos),
                                              jnp.where(m_up, up, pos)))
        if W > 1:
            lmax = _roll(vmax, 1, 1)
            rmax = _roll(vmax, kW - 1, 1)
            hmax = jnp.maximum(vmax, jnp.maximum(jnp.where(m_lf, lmax, neg),
                                                 jnp.where(m_rt, rmax, neg)))
            lmin = _roll(vmin, 1, 1)
            rmin = _roll(vmin, kW - 1, 1)
            hmin = jnp.minimum(vmin, jnp.minimum(jnp.where(m_lf, lmin, pos),
                                                 jnp.where(m_rt, rmin, pos)))
        else:
            hmax, hmin = vmax, vmin
        return hmax + hmin

    def csum(x):  # exact f32 column sum, (S, kW) -> (1, kW)
        return jnp.sum(x, axis=0, keepdims=True)

    # ---- strip loop: register-sized working set, accumulate 6 (1,kW) partials --
    def strip_body(s, carry):
        a_p, a_t, a_pt, a_ps, a_ts, a_psts = carry
        start = pl.multiple_of(s * S, S)
        p = p_ref[pl.ds(start, S), :].astype(f32)
        t = t_ref[pl.ds(start, S), :].astype(f32)
        # Order minimizes simultaneously-live full-strip arrays:
        a_p = a_p + csum(p)
        a_t = a_t + csum(t)
        a_pt = a_pt + csum(p * t)
        ps = pool_terms(p)               # p dead after this
        a_ps = a_ps + csum(ps)
        ts = pool_terms(t)               # only ps stays live across this pool
        a_ts = a_ts + csum(ts)
        a_psts = a_psts + csum(ps * ts)
        return a_p, a_t, a_pt, a_ps, a_ts, a_psts

    zero = jnp.zeros((1, kW), f32)
    acc = lax.fori_loop(0, n_strips, strip_body,
                        (zero, zero, zero, zero, zero, zero))
    out_ref[0] = jnp.concatenate(list(acc) + [zero, zero], axis=0)


def _largest_divisor_leq(n, cap):
    cap = max(1, min(n, cap))
    for d in range(cap, 0, -1):
        if n % d == 0:
            return d
    return 1


def cldice_loss(pred, target, *, target_block_rows=8192, target_strip_rows=64):
    assert pred.shape == target.shape and pred.ndim == 4
    N, C, H, W = pred.shape

    def _as_kernel_dtype(x):
        # f32/bf16 stream straight from HBM and are cast to f32 in-kernel; other
        # dtypes (incl. f16) are cast in the wrapper to keep lowering on safe types.
        return x if x.dtype in (jnp.float32, jnp.bfloat16) else x.astype(jnp.float32)

    pred = _as_kernel_dtype(pred)
    target = _as_kernel_dtype(target)

    # ---- lane packing: k image rows per slab row (row-major reshape is free) ---
    if W <= 128:
        k = 1
        for cand in range(min(H, 128 // W), 0, -1):
            if H % cand == 0:
                k = cand
                break
    else:
        k = 1  # TODO(synk): split wide rows (W > 128) across several slab rows.
    # TODO(synk): when no k > 1 divides H, pad H with masked zero rows to restore
    # full lane density (needs extra in-kernel masking of padded rows).
    kW = k * W
    rows_per_img = H // k
    R = N * C * rows_per_img

    def _sub(x):  # sublane quantum by dtype
        return {4: 8, 2: 16, 1: 32}.get(jnp.dtype(x.dtype).itemsize, 8)

    sublane = max(_sub(pred), _sub(target))
    unit = rows_per_img * sublane // math.gcd(rows_per_img, sublane)  # lcm

    pred2 = pred.reshape(R, kW)
    target2 = target.reshape(R, kW)

    # ---- pad with whole zero images so R tiles into image- & sublane-aligned
    #      blocks (zero images contribute exactly 0 to every partial sum) --------
    if R % unit != 0:
        pad_rows = unit - (R % unit)
        pred2 = jnp.pad(pred2, ((0, pad_rows), (0, 0)))
        target2 = jnp.pad(target2, ((0, pad_rows), (0, 0)))
        R += pad_rows

    # ---- block sizing: as big as a ~24 MiB input-window budget allows (2 inputs
    #      x 2 pipeline buffers), but keep >= 2 tiles for v7x megacore sharding ---
    bytes_per_row = kW * (jnp.dtype(pred2.dtype).itemsize
                          + jnp.dtype(target2.dtype).itemsize)
    vmem_input_budget = 24 * 1024 * 1024
    max_rows_by_vmem = max(unit,
                           (vmem_input_budget // (2 * bytes_per_row)) // unit * unit)
    target_rows = min(target_block_rows, max_rows_by_vmem)

    n_units = R // unit
    cap_units = max(1, min(n_units, target_rows // unit))
    if n_units >= 2:
        cap_units = min(cap_units, n_units // 2)   # ensure >= 2 grid tiles
    block_units = _largest_divisor_leq(n_units, cap_units)
    block_rows = block_units * unit
    num_tiles = R // block_rows

    # ---- strip sizing (in-kernel register tiling), image- & sublane-aligned ----
    strip_units = _largest_divisor_leq(block_units, max(1, target_strip_rows // unit))
    strip_rows = strip_units * unit
    # TODO(synk): very tall images with k == 1 force strip_rows == rows_per_img
    # (may spill); a 1-row halo-read strip would lift that restriction.

    partials = pl.pallas_call(
        functools.partial(_cldice_partial_kernel, H=H, W=W, k=k,
                          rows_per_img=rows_per_img, strip_rows=strip_rows),
        out_shape=jax.ShapeDtypeStruct((num_tiles, 8, kW), jnp.float32),
        grid=(num_tiles,),
        in_specs=[
            pl.BlockSpec((block_rows, kW), lambda i: (i, 0)),
            pl.BlockSpec((block_rows, kW), lambda i: (i, 0)),
        ],
        out_specs=pl.BlockSpec((1, 8, kW), lambda i: (i, 0, 0)),
        compiler_params=pltpu.CompilerParams(
            dimension_semantics=("parallel",),     # shards tiles across v7x's 2 TCs
            vmem_limit_bytes=48 * 1024 * 1024,     # ample for ~16-24 MiB of windows
        ),
    )(pred2, target2)

    # Tiny final reduction + dice formula in the wrapper.
    sums = jnp.sum(partials, axis=(0, 2))          # (8,): [Σp, Σt, Σpt, Σps, Σts, Σps·ts, 0, 0]
    smooth = jnp.float32(1.0)
    dice = 1.0 - (2.0 * sums[2] + smooth) / (sums[0] + sums[1] + smooth)
    dice_s = 1.0 - (2.0 * sums[5] + smooth) / (sums[3] + sums[4] + smooth)
    return dice + dice_s


# ---------------- pure-JAX reference (correctness check only) ----------------
def _maxpool_ref(x):
    return lax.reduce_window(
        x, -jnp.inf, lax.max, (1, 1, 3, 3), (1, 1, 1, 1),
        padding=((0, 0), (0, 0), (1, 1), (1, 1)))


def _dice_ref(a, b):
    smooth = 1.0
    a = a.reshape(-1)
    b = b.reshape(-1)
    inter = jnp.sum(a * b)
    return 1.0 - (2.0 * inter + smooth) / (jnp.sum(a) + jnp.sum(b) + smooth)


def cldice_ref(pred, target):
    pred_s = _maxpool_ref(pred) - _maxpool_ref(-pred)
    target_s = _maxpool_ref(target) - _maxpool_ref(-target)
    return _dice_ref(pred, target) + _dice_ref(pred_s, target_s)


if __name__ == "__main__":
    key = jax.random.PRNGKey(0)
    k1, k2 = jax.random.split(key)
    shape = (2, 4, 16, 16)  # N, C, H, W
    pred = jax.nn.sigmoid(jax.random.normal(k1, shape, jnp.float32))
    target = (jax.random.uniform(k2, shape) > 0.5).astype(jnp.float32)

    out = cldice_loss(pred, target)
    out = jax.block_until_ready(out)

    ref = jax.block_until_ready(cldice_ref(pred, target))
    assert jnp.allclose(out, ref, atol=1e-4, rtol=1e-4), (out, ref)
    print("KERNEL_OK")
</pallas_src>

<mosaic_0001>
module attributes {stable_mosaic.version = 11 : i64} {
  func.func @_cldice_partial_kernel(%arg0: i32, %arg1: memref<8x128xf32, #tpu.memory_space<vmem>>, %arg2: memref<8x128xf32, #tpu.memory_space<vmem>>, %arg3: memref<1x8x128xf32, #tpu.memory_space<vmem>>) attributes {dimension_semantics = [#tpu.dimension_semantics<parallel>], iteration_bounds = array<i64: 2>, scalar_prefetch = 0 : i64, scratch_operands = 0 : i64, tpu.core_type = #tpu.core_type<tc>, window_params = [{transform_indices = @transform_0, window_bounds = array<i64: 8, 128>}, {transform_indices = @transform_1, window_bounds = array<i64: 8, 128>}, {transform_indices = @transform_2, window_bounds = array<i64: 1, 8, 128>}]} {
    %0 = tpu.iota {dimensions = array<i32: 1>} : vector<8x128xi32>
    %1 = tpu.iota {dimensions = array<i32: 0>} : vector<8x128xi32>
    %c16_i32 = arith.constant 16 : i32
    %c0_i32 = arith.constant 0 : i32
    %2 = arith.cmpi eq, %c16_i32, %c0_i32 : i32
    %c1_i32 = arith.constant 1 : i32
    %3 = arith.select %2, %c1_i32, %c16_i32 : i32
    %4 = vector.broadcast %3 : i32 to vector<8x128xi32>
    %5 = arith.remsi %0, %4 : vector<8x128xi32>
    %c0_i32_0 = arith.constant 0 : i32
    %6 = vector.broadcast %c0_i32_0 : i32 to vector<8x128xi32>
    %7 = arith.cmpi ne, %5, %6 : vector<8x128xi32>
    %c0_i32_1 = arith.constant 0 : i32
    %8 = vector.broadcast %c0_i32_1 : i32 to vector<8x128xi32>
    %9 = arith.cmpi slt, %5, %8 : vector<8x128xi32>
    %c0_i32_2 = arith.constant 0 : i32
    %10 = arith.cmpi slt, %3, %c0_i32_2 : i32
    %11 = vector.broadcast %10 : i1 to vector<8x128xi1>
    %12 = vector.broadcast %11 : vector<8x128xi1> to vector<8x128xi1>
    %13 = arith.xori %9, %12 : vector<8x128xi1>
    %14 = arith.andi %13, %7 : vector<8x128xi1>
    %15 = vector.broadcast %3 : i32 to vector<8x128xi32>
    %16 = arith.addi %5, %15 : vector<8x128xi32>
    %17 = arith.select %14, %16, %5 : vector<8x128xi1>, vector<8x128xi32>
    %c0_i32_3 = arith.constant 0 : i32
    %18 = vector.broadcast %c0_i32_3 : i32 to vector<8x128xi32>
    %19 = arith.cmpi sgt, %17, %18 : vector<8x128xi32>
    %c15_i32 = arith.constant 15 : i32
    %20 = vector.broadcast %c15_i32 : i32 to vector<8x128xi32>
    %21 = arith.cmpi slt, %17, %20 : vector<8x128xi32>
    %c2_i32 = arith.constant 2 : i32
    %c0_i32_4 = arith.constant 0 : i32
    %22 = arith.cmpi eq, %c2_i32, %c0_i32_4 : i32
    %c1_i32_5 = arith.constant 1 : i32
    %23 = arith.select %22, %c1_i32_5, %c2_i32 : i32
    %24 = vector.broadcast %23 : i32 to vector<8x128xi32>
    %25 = arith.remsi %1, %24 : vector<8x128xi32>
    %c0_i32_6 = arith.constant 0 : i32
    %26 = vector.broadcast %c0_i32_6 : i32 to vector<8x128xi32>
    %27 = arith.cmpi ne, %25, %26 : vector<8x128xi32>
    %c0_i32_7 = arith.constant 0 : i32
    %28 = vector.broadcast %c0_i32_7 : i32 to vector<8x128xi32>
    %29 = arith.cmpi slt, %25, %28 : vector<8x128xi32>
    %c0_i32_8 = arith.constant 0 : i32
    %30 = arith.cmpi slt, %23, %c0_i32_8 : i32
    %31 = vector.broadcast %30 : i1 to vector<8x128xi1>
    %32 = vector.broadcast %31 : vector<8x128xi1> to vector<8x128xi1>
    %33 = arith.xori %29, %32 : vector<8x128xi1>
    %34 = arith.andi %33, %27 : vector<8x128xi1>
    %35 = vector.broadcast %23 : i32 to vector<8x128xi32>
    %36 = arith.addi %25, %35 : vector<8x128xi32>
    %37 = arith.select %34, %36, %25 : vector<8x128xi1>, vector<8x128xi32>
    %c0_i32_9 = arith.constant 0 : i32
    %38 = vector.broadcast %c0_i32_9 : i32 to vector<8x128xi32>
    %39 = arith.cmpi eq, %37, %38 : vector<8x128xi32>
    %c16_i32_10 = arith.constant 16 : i32
    %40 = vector.broadcast %c16_i32_10 : i32 to vector<8x128xi32>
    %41 = arith.cmpi slt, %0, %40 : vector<8x128xi32>
    %42 = arith.andi %39, %41 : vector<8x128xi1>
    %cst = arith.constant dense<true> : vector<8x128xi1>
    %43 = arith.xori %42, %cst : vector<8x128xi1>
    %c1_i32_11 = arith.constant 1 : i32
    %44 = vector.broadcast %c1_i32_11 : i32 to vector<8x128xi32>
    %45 = arith.cmpi eq, %37, %44 : vector<8x128xi32>
    %c112_i32 = arith.constant 112 : i32
    %46 = vector.broadcast %c112_i32 : i32 to vector<8x128xi32>
    %47 = arith.cmpi sge, %0, %46 : vector<8x128xi32>
    %48 = arith.andi %45, %47 : vector<8x128xi1>
    %cst_12 = arith.constant dense<true> : vector<8x128xi1>
    %49 = arith.xori %48, %cst_12 : vector<8x128xi1>
    %cst_13 = arith.constant 0.000000e+00 : f32
    %50 = vector.broadcast %cst_13 : f32 to vector<1x128xf32>
    %cst_14 = arith.constant 0xFF800000 : f32
    %cst_15 = arith.constant 0x7F800000 : f32
    %c0_i32_16 = arith.constant 0 : i32
    %c8_i32 = arith.constant 8 : i32
    %51 = arith.muli %c0_i32_16, %c8_i32 : i32
    %52 = tpu.assume_multiple %51, 8 : i32
    %53 = arith.index_cast %52 : i32 to index
    %c0 = arith.constant 0 : index
    %54 = vector.load %arg1[%53, %c0] : memref<8x128xf32, #tpu.memory_space<vmem>>, vector<8x128xf32>
    %55 = arith.index_cast %52 : i32 to index
    %c0_17 = arith.constant 0 : index
    %56 = vector.load %arg2[%55, %c0_17] : memref<8x128xf32, #tpu.memory_space<vmem>>, vector<8x128xf32>
    %cst_18 = arith.constant dense<0.000000e+00> : vector<128xf32>
    %57 = vector.multi_reduction <add>, %54, %cst_18 [0] : vector<8x128xf32> to vector<128xf32>
    %58 = vector.shape_cast %57 : vector<128xf32> to vector<1x128xf32>
    %59 = arith.addf %50, %58 : vector<1x128xf32>
    %cst_19 = arith.constant dense<0.000000e+00> : vector<128xf32>
    %60 = vector.multi_reduction <add>, %56, %cst_19 [0] : vector<8x128xf32> to vector<128xf32>
    %61 = vector.shape_cast %60 : vector<128xf32> to vector<1x128xf32>
    %62 = arith.addf %50, %61 : vector<1x128xf32>
    %63 = arith.mulf %54, %56 : vector<8x128xf32>
    %cst_20 = arith.constant dense<0.000000e+00> : vector<128xf32>
    %64 = vector.multi_reduction <add>, %63, %cst_20 [0] : vector<8x128xf32> to vector<128xf32>
    %65 = vector.shape_cast %64 : vector<128xf32> to vector<1x128xf32>
    %66 = arith.addf %50, %65 : vector<1x128xf32>
    %c112_i32_21 = arith.constant 112 : i32
    %67 = tpu.dynamic_rotate %54 by %c112_i32_21 dim 1 : vector<8x128xf32>, i32 -> vector<8x128xf32>
    %c7_i32 = arith.constant 7 : i32
    %68 = tpu.dynamic_rotate %67 by %c7_i32 dim 0 : vector<8x128xf32>, i32 -> vector<8x128xf32>
    %c112_i32_22 = arith.constant 112 : i32
    %69 = vector.broadcast %c112_i32_22 : i32 to vector<8x128xi32>
    %70 = arith.cmpi slt, %0, %69 : vector<8x128xi32>
    %71 = arith.select %70, %67, %68 : vector<8x128xi1>, vector<8x128xf32>
    %c16_i32_23 = arith.constant 16 : i32
    %72 = tpu.dynamic_rotate %54 by %c16_i32_23 dim 1 : vector<8x128xf32>, i32 -> vector<8x128xf32>
    %c1_i32_24 = arith.constant 1 : i32
    %73 = tpu.dynamic_rotate %72 by %c1_i32_24 dim 0 : vector<8x128xf32>, i32 -> vector<8x128xf32>
    %c16_i32_25 = arith.constant 16 : i32
    %74 = vector.broadcast %c16_i32_25 : i32 to vector<8x128xi32>
    %75 = arith.cmpi sge, %0, %74 : vector<8x128xi32>
    %76 = arith.select %75, %72, %73 : vector<8x128xi1>, vector<8x128xf32>
    %77 = vector.broadcast %cst_14 : f32 to vector<8x128xf32>
    %78 = arith.select %49, %71, %77 : vector<8x128xi1>, vector<8x128xf32>
    %79 = vector.broadcast %cst_14 : f32 to vector<8x128xf32>
    %80 = arith.select %43, %76, %79 : vector<8x128xi1>, vector<8x128xf32>
    %81 = arith.maximumf %78, %80 : vector<8x128xf32>
    %82 = arith.maximumf %54, %81 : vector<8x128xf32>
    %83 = vector.broadcast %cst_15 : f32 to vector<8x128xf32>
    %84 = arith.select %49, %71, %83 : vector<8x128xi1>, vector<8x128xf32>
    %85 = vector.broadcast %cst_15 : f32 to vector<8x128xf32>
    %86 = arith.select %43, %76, %85 : vector<8x128xi1>, vector<8x128xf32>
    %87 = arith.minimumf %84, %86 : vector<8x128xf32>
    %88 = arith.minimumf %54, %87 : vector<8x128xf32>
    %c1_i32_26 = arith.constant 1 : i32
    %89 = tpu.dynamic_rotate %82 by %c1_i32_26 dim 1 : vector<8x128xf32>, i32 -> vector<8x128xf32>
    %c127_i32 = arith.constant 127 : i32
    %90 = tpu.dynamic_rotate %82 by %c127_i32 dim 1 : vector<8x128xf32>, i32 -> vector<8x128xf32>
    %91 = vector.broadcast %cst_14 : f32 to vector<8x128xf32>
    %92 = arith.select %19, %89, %91 : vector<8x128xi1>, vector<8x128xf32>
    %93 = vector.broadcast %cst_14 : f32 to vector<8x128xf32>
    %94 = arith.select %21, %90, %93 : vector<8x128xi1>, vector<8x128xf32>
    %95 = arith.maximumf %92, %94 : vector<8x128xf32>
    %96 = arith.maximumf %82, %95 : vector<8x128xf32>
    %c1_i32_27 = arith.constant 1 : i32
    %97 = tpu.dynamic_rotate %88 by %c1_i32_27 dim 1 : vector<8x128xf32>, i32 -> vector<8x128xf32>
    %c127_i32_28 = arith.constant 127 : i32
    %98 = tpu.dynamic_rotate %88 by %c127_i32_28 dim 1 : vector<8x128xf32>, i32 -> vector<8x128xf32>
    %99 = vector.broadcast %cst_15 : f32 to vector<8x128xf32>
    %100 = arith.select %19, %97, %99 : vector<8x128xi1>, vector<8x128xf32>
    %101 = vector.broadcast %cst_15 : f32 to vector<8x128xf32>
    %102 = arith.select %21, %98, %101 : vector<8x128xi1>, vector<8x128xf32>
    %103 = arith.minimumf %100, %102 : vector<8x128xf32>
    %104 = arith.minimumf %88, %103 : vector<8x128xf32>
    %105 = arith.addf %96, %104 : vector<8x128xf32>
    %cst_29 = arith.constant dense<0.000000e+00> : vector<128xf32>
    %106 = vector.multi_reduction <add>, %105, %cst_29 [0] : vector<8x128xf32> to vector<128xf32>
    %107 = vector.shape_cast %106 : vector<128xf32> to vector<1x128xf32>
    %108 = arith.addf %50, %107 : vector<1x128xf32>
    %c112_i32_30 = arith.constant 112 : i32
    %109 = tpu.dynamic_rotate %56 by %c112_i32_30 dim 1 : vector<8x128xf32>, i32 -> vector<8x128xf32>
    %c7_i32_31 = arith.constant 7 : i32
    %110 = tpu.dynamic_rotate %109 by %c7_i32_31 dim 0 : vector<8x128xf32>, i32 -> vector<8x128xf32>
    %c112_i32_32 = arith.constant 112 : i32
    %111 = vector.broadcast %c112_i32_32 : i32 to vector<8x128xi32>
    %112 = arith.cmpi slt, %0, %111 : vector<8x128xi32>
    %113 = arith.select %112, %109, %110 : vector<8x128xi1>, vector<8x128xf32>
    %c16_i32_33 = arith.constant 16 : i32
    %114 = tpu.dynamic_rotate %56 by %c16_i32_33 dim 1 : vector<8x128xf32>, i32 -> vector<8x128xf32>
    %c1_i32_34 = arith.constant 1 : i32
    %115 = tpu.dynamic_rotate %114 by %c1_i32_34 dim 0 : vector<8x128xf32>, i32 -> vector<8x128xf32>
    %c16_i32_35 = arith.constant 16 : i32
    %116 = vector.broadcast %c16_i32_35 : i32 to vector<8x128xi32>
    %117 = arith.cmpi sge, %0, %116 : vector<8x128xi32>
    %118 = arith.select %117, %114, %115 : vector<8x128xi1>, vector<8x128xf32>
    %119 = vector.broadcast %cst_14 : f32 to vector<8x128xf32>
    %120 = arith.select %49, %113, %119 : vector<8x128xi1>, vector<8x128xf32>
    %121 = vector.broadcast %cst_14 : f32 to vector<8x128xf32>
    %122 = arith.select %43, %118, %121 : vector<8x128xi1>, vector<8x128xf32>
    %123 = arith.maximumf %120, %122 : vector<8x128xf32>
    %124 = arith.maximumf %56, %123 : vector<8x128xf32>
    %125 = vector.broadcast %cst_15 : f32 to vector<8x128xf32>
    %126 = arith.select %49, %113, %125 : vector<8x128xi1>, vector<8x128xf32>
    %127 = vector.broadcast %cst_15 : f32 to vector<8x128xf32>
    %128 = arith.select %43, %118, %127 : vector<8x128xi1>, vector<8x128xf32>
    %129 = arith.minimumf %126, %128 : vector<8x128xf32>
    %130 = arith.minimumf %56, %129 : vector<8x128xf32>
    %c1_i32_36 = arith.constant 1 : i32
    %131 = tpu.dynamic_rotate %124 by %c1_i32_36 dim 1 : vector<8x128xf32>, i32 -> vector<8x128xf32>
    %c127_i32_37 = arith.constant 127 : i32
    %132 = tpu.dynamic_rotate %124 by %c127_i32_37 dim 1 : vector<8x128xf32>, i32 -> vector<8x128xf32>
    %133 = vector.broadcast %cst_14 : f32 to vector<8x128xf32>
    %134 = arith.select %19, %131, %133 : vector<8x128xi1>, vector<8x128xf32>
    %135 = vector.broadcast %cst_14 : f32 to vector<8x128xf32>
    %136 = arith.select %21, %132, %135 : vector<8x128xi1>, vector<8x128xf32>
    %137 = arith.maximumf %134, %136 : vector<8x128xf32>
    %138 = arith.maximumf %124, %137 : vector<8x128xf32>
    %c1_i32_38 = arith.constant 1 : i32
    %139 = tpu.dynamic_rotate %130 by %c1_i32_38 dim 1 : vector<8x128xf32>, i32 -> vector<8x128xf32>
    %c127_i32_39 = arith.constant 127 : i32
    %140 = tpu.dynamic_rotate %130 by %c127_i32_39 dim 1 : vector<8x128xf32>, i32 -> vector<8x128xf32>
    %141 = vector.broadcast %cst_15 : f32 to vector<8x128xf32>
    %142 = arith.select %19, %139, %141 : vector<8x128xi1>, vector<8x128xf32>
    %143 = vector.broadcast %cst_15 : f32 to vector<8x128xf32>
    %144 = arith.select %21, %140, %143 : vector<8x128xi1>, vector<8x128xf32>
    %145 = arith.minimumf %142, %144 : vector<8x128xf32>
    %146 = arith.minimumf %130, %145 : vector<8x128xf32>
    %147 = arith.addf %138, %146 : vector<8x128xf32>
    %cst_40 = arith.constant dense<0.000000e+00> : vector<128xf32>
    %148 = vector.multi_reduction <add>, %147, %cst_40 [0] : vector<8x128xf32> to vector<128xf32>
    %149 = vector.shape_cast %148 : vector<128xf32> to vector<1x128xf32>
    %150 = arith.addf %50, %149 : vector<1x128xf32>
    %151 = arith.mulf %105, %147 : vector<8x128xf32>
    %cst_41 = arith.constant dense<0.000000e+00> : vector<128xf32>
    %152 = vector.multi_reduction <add>, %151, %cst_41 [0] : vector<8x128xf32> to vector<128xf32>
    %153 = vector.shape_cast %152 : vector<128xf32> to vector<1x128xf32>
    %154 = arith.addf %50, %153 : vector<1x128xf32>
    %c1_i32_42 = arith.constant 1 : i32
    %155 = tpu.concatenate %59, %62, %66, %108, %150, %154, %50, %50 in 0 : vector<1x128xf32>, vector<1x128xf32>, vector<1x128xf32>, vector<1x128xf32>, vector<1x128xf32>, vector<1x128xf32>, vector<1x128xf32>, vector<1x128xf32> -> vector<8x128xf32>
    %c0_43 = arith.constant 0 : index
    %c0_44 = arith.constant 0 : index
    %c0_45 = arith.constant 0 : index
    %156 = vector.load %arg3[%c0_43, %c0_44, %c0_45] : memref<1x8x128xf32, #tpu.memory_space<vmem>>, vector<1x8x128xf32>
    %157 = vector.shape_cast %156 : vector<1x8x128xf32> to vector<8x128xf32>
    %158 = vector.shape_cast %155 : vector<8x128xf32> to vector<1x8x128xf32>
    tpu.vector_store %arg3[%c0_43, %c0_44, %c0_45], %158 {strides = array<i32>} : memref<1x8x128xf32, #tpu.memory_space<vmem>>, vector<1x8x128xf32>,
    return
  }
  func.func @transform_0(%arg0: i32) -> (i32, i32) {
    %c0_i32 = arith.constant 0 : i32
    %c0_i32_0 = arith.constant 0 : i32
    return %arg0, %c0_i32 : i32, i32
  }
  func.func @transform_1(%arg0: i32) -> (i32, i32) {
    %c0_i32 = arith.constant 0 : i32
    %c0_i32_0 = arith.constant 0 : i32
    return %arg0, %c0_i32 : i32, i32
  }
  func.func @transform_2(%arg0: i32) -> (i32, i32, i32) {
    %c0_i32 = arith.constant 0 : i32
    %c0_i32_0 = arith.constant 0 : i32
    %c0_i32_1 = arith.constant 0 : i32
    return %arg0, %c0_i32, %c0_i32_0 : i32, i32, i32
  }
}

</mosaic_0001>

<llo_original>
// kernel: tpu_custom_call.1
$region0: #{tpu_custom_call.1}
  #allocation0 [shape = 'u32[]', space=smem, size = 0x4, offset = 0x4, fixed_abs, tag = 'smem constant byte address 0x4 - core index']
  #allocation1 [shape = 'u32[144,128]{1,0:T(1,128)}', space=vmem, size = 0x12000, scoped, tag = 'internal scratch']
  %s0 = inlined_call_operand.hbm [shape: f32[16,128], index: 0, kind: input, shape index: {}]
  %s1 = inlined_call_operand.hbm [shape: f32[16,128], index: 1, kind: input, shape index: {}]
  %s2 = inlined_call_operand.hbm [shape: f32[2,8,128], index: 2, kind: output, shape index: {}]
  %s3 = sld [smem:[#allocation0]]
  $region49: #{tpu_custom_call.1} parent=0
    _
  %s5 = ssub.s32 1, %s3
  %s6 = scalar_select 0, %s5, %s3
  $region1: #{tpu_custom_call.1} parent=0
    #allocation2 [shape = 'u8[8192]{0}', space=vmem, size = 0x2000, scoped, tag = 'input window, operand 0']
    #allocation3 [shape = 's32[2]{0}', space=sflag, size = 0x8, scoped, tag = 'scoped memory for tpu_custom_call.1']
    #allocation4 [shape = 's32[2]{0}', space=sflag, size = 0x8, scoped, tag = 'scoped memory for tpu_custom_call.1']
    #allocation5 [shape = 'u8[8192]{0}', space=vmem, size = 0x2000, scoped, tag = 'input window, operand 1']
    #allocation6 [shape = 's32[2]{0}', space=sflag, size = 0x8, scoped, tag = 'scoped memory for tpu_custom_call.1']
    #allocation7 [shape = 'u8[8192]{0}', space=vmem, size = 0x2000, scoped, tag = 'output window, operand 0']
    %7 = vsyncpa [#allocation3], 0
    %s8 = scalar_lea.sflag [#allocation3], 1
    %9 = vsyncpa %s8, 0
    %10 = vsyncpa [#allocation6], 0
    %s11 = scalar_lea.sflag [#allocation6], 1
    %12 = vsyncpa %s11, 0
    %13 = vsyncpa [#allocation4], 0
    %s14 = scalar_lea.sflag [#allocation4], 1
    %15 = vsyncpa %s14, 0
    loop: start=0, step=1, limit=4
    $region2: #{tpu_custom_call.1} parent=1 // loop_pre_header
      _
    $region3: #{tpu_custom_call.1} parent=1 // loop_header
      %s17 = sphi 0, %s21
      %p18 = scmp.ge.s32.totalorder %s17, 4
      %s27 = sphi 0, %s29
      %s30 = sphi 0, %s27
      %s31 = sphi 0, %s30
      %s47 = sphi 0, %s31
      %s53 = sphi 0, %s55
      %s56 = sphi 0, %s53
      %s57 = sphi 0, %s56
      %s73 = sphi 0, %s57
      %s79 = sphi 0, %s81
      %s82 = sphi 0, %s79
      %s83 = sphi 0, %s82
      %s99 = sphi 0, %s83
    $region4: #{tpu_custom_call.1} parent=1 // loop_header_branch
      %20 = sbr.rel (%p18) target = $region8
    $region5: #{tpu_custom_call.1} parent=1 // loop_body
      %s22 = ssub.s32 %s17, 1
      %s23 = ssub.s32 %s17, 2
      %s24 = sadd.s32 %s17, 1
      %s25 = ssub.s32 %s17, %s24
      %p26 = scmp.eq.s32.totalorder %s25, 0
      %s28 = sadd.s32 %s27, 1
      %s29 = scalar_select %p26, %s27, %s28
      %p32 = pneg %p26
      %p33 = scmp.eq.s32.totalorder %s17, 1
      %p34 = por %p32, %p33
      %p35 = scmp.ne.s32.totalorder %s27, %s30
      %p36 = scmp.eq.s32.totalorder %s17, 0
      %p37 = por %p35, %p36
      %p38 = scmp.ne.s32.totalorder %s27, %s30
      %p39 = scmp.eq.s32.totalorder %s22, 1
      %p40 = por %p38, %p39
      %p41 = scmp.ne.s32.totalorder %s30, %s31
      %p42 = scmp.eq.s32.totalorder %s22, 0
      %p43 = por %p41, %p42
      %p44 = scmp.ne.s32.totalorder %s30, %s31
      %p45 = scmp.eq.s32.totalorder %s23, 1
      %p46 = por %p44, %p45
      %p48 = scmp.ne.s32.totalorder %s31, %s47
      %p49 = scmp.eq.s32.totalorder %s23, 0
      %p50 = por %p48, %p49
      %s51 = ssub.s32 %s17, %s24
      %p52 = scmp.eq.s32.totalorder %s51, 0
      %s54 = sadd.s32 %s53, 1
      %s55 = scalar_select %p52, %s53, %s54
      %p58 = pneg %p52
      %p59 = scmp.eq.s32.totalorder %s17, 1
      %p60 = por %p58, %p59
      %p61 = scmp.ne.s32.totalorder %s53, %s56
      %p62 = scmp.eq.s32.totalorder %s17, 0
      %p63 = por %p61, %p62
      %p64 = scmp.ne.s32.totalorder %s53, %s56
      %p65 = scmp.eq.s32.totalorder %s22, 1
      %p66 = por %p64, %p65
      %p67 = scmp.ne.s32.totalorder %s56, %s57
      %p68 = scmp.eq.s32.totalorder %s22, 0
      %p69 = por %p67, %p68
      %p70 = scmp.ne.s32.totalorder %s56, %s57
      %p71 = scmp.eq.s32.totalorder %s23, 1
      %p72 = por %p70, %p71
      %p74 = scmp.ne.s32.totalorder %s57, %s73
      %p75 = scmp.eq.s32.totalorder %s23, 0
      %p76 = por %p74, %p75
      %s77 = ssub.s32 %s17, %s24
      %p78 = scmp.eq.s32.totalorder %s77, 0
      %s80 = sadd.s32 %s79, 1
      %s81 = scalar_select %p78, %s79, %s80
      %p84 = pneg %p78
      %p85 = scmp.eq.s32.totalorder %s17, 1
      %p86 = por %p84, %p85
      %p87 = scmp.ne.s32.totalorder %s79, %s82
      %p88 = scmp.eq.s32.totalorder %s17, 0
      %p89 = por %p87, %p88
      %p90 = scmp.ne.s32.totalorder %s79, %s82
      %p91 = scmp.eq.s32.totalorder %s22, 1
      %p92 = por %p90, %p91
      %p93 = scmp.ne.s32.totalorder %s82, %s83
      %p94 = scmp.eq.s32.totalorder %s22, 0
      %p95 = por %p93, %p94
      %p96 = scmp.ne.s32.totalorder %s82, %s83
      %p97 = scmp.eq.s32.totalorder %s23, 1
      %p98 = por %p96, %p97
      %p100 = scmp.ne.s32.totalorder %s83, %s99
      %p101 = scmp.eq.s32.totalorder %s23, 0
      %p102 = por %p100, %p101
      %p103 = scmp.le.s32.totalorder 1, %s17
      %p104 = scmp.lt.s32.totalorder %s17, 3
      %p105 = pnand %p103, %p104
      %p106 = pneg %p105
      // Predicated region
      $region9: #{tpu_custom_call.1} parent=5 // pred_check
        _
      $region10: #{tpu_custom_call.1} parent=5 // pred_check_branch
        %108 = sbr.rel (%p105) target = $region12
      $region11: #{tpu_custom_call.1} parent=5 // pred_region
        %s109 = ssub.s32 %s17, 1
      $region12: #{tpu_custom_call.1} parent=5 // pred_fallthru
        _
      %p110 = scmp.lt.s32.totalorder %s17, 2
      // Predicated region
      $region13: #{tpu_custom_call.1} parent=5 // pred_check
        %p111 = pneg %p110
      $region14: #{tpu_custom_call.1} parent=5 // pred_check_branch
        %113 = sbr.rel (%p111) target = $region16
      $region15: #{tpu_custom_call.1} parent=5 // pred_region
        // Predicated region
        $region17: #{tpu_custom_call.1} parent=15 // pred_check
          %p114 = pneg %p37
        $region18: #{tpu_custom_call.1} parent=15 // pred_check_branch
          %116 = sbr.rel (%p114) target = $region20
        $region19: #{tpu_custom_call.1} parent=15 // pred_region
          %s117 = sand.u32 %s27, 1
          %s118 = scalar_lea.sflag [#allocation3], %s117
          %s119 = sand.u32 %s27, 1
          %s120 = smul.addr %s119, 8
          %s121 = scalar_lea.vmem [#allocation2], %s120
          %s123 = ssub.s32 128, 128
          %124 = vsyncadd %s118, %s123
          %s125 = smul.addr %s17, 128
          %s126 = scalar_lea.hbm %s0, %s125
          %s128 = sshll.u32 %s121, 4
          %s129 = int_to_ptr.vmem [resolvable:$true] %s128
          %131 = dma.hbm_to_vmem [thread:$0]  %s126, 128, %s129, %s118
        $region20: #{tpu_custom_call.1} parent=15 // pred_fallthru
          _
        // Predicated region
        $region21: #{tpu_custom_call.1} parent=15 // pred_check
          %p132 = pneg %p63
        $region22: #{tpu_custom_call.1} parent=15 // pred_check_branch
          %134 = sbr.rel (%p132) target = $region24
        $region23: #{tpu_custom_call.1} parent=15 // pred_region
          %s135 = sand.u32 %s53, 1
          %s136 = scalar_lea.sflag [#allocation6], %s135
          %s137 = sand.u32 %s53, 1
          %s138 = smul.addr %s137, 8
          %s139 = scalar_lea.vmem [#allocation5], %s138
          %s141 = ssub.s32 128, 128
          %142 = vsyncadd %s136, %s141
          %s143 = smul.addr %s17, 128
          %s144 = scalar_lea.hbm %s1, %s143
          %s146 = sshll.u32 %s139, 4
          %s147 = int_to_ptr.vmem [resolvable:$true] %s146
          %149 = dma.hbm_to_vmem [thread:$0]  %s144, 128, %s147, %s136
        $region24: #{tpu_custom_call.1} parent=15 // pred_fallthru
          _
      $region16: #{tpu_custom_call.1} parent=5 // pred_fallthru
        _
      %p150 = scmp.le.s32.totalorder 1, %s17
      %p151 = scmp.lt.s32.totalorder %s17, 3
      %p152 = pnand %p150, %p151
      %p153 = pneg %p152
      // Predicated region
      $region25: #{tpu_custom_call.1} parent=5 // pred_check
        _
      $region26: #{tpu_custom_call.1} parent=5 // pred_check_branch
        %155 = sbr.rel (%p152) target = $region28
      $region27: #{tpu_custom_call.1} parent=5 // pred_region
        %s156 = ssub.s32 %s17, 1
        %s157 = sand.u32 %s30, 1
        %s158 = scalar_lea.sflag [#allocation3], %s157
        %s159 = sand.u32 %s30, 1
        %s160 = smul.addr %s159, 8
        %s161 = scalar_lea.vmem [#allocation2], %s160
        // Predicated region
        $region29: #{tpu_custom_call.1} parent=27 // pred_check
          %p162 = pneg %p43
        $region30: #{tpu_custom_call.1} parent=27 // pred_check_branch
          %164 = sbr.rel (%p162) target = $region32
        $region31: #{tpu_custom_call.1} parent=27 // pred_region
          %165 = dma.done %s158, 128
        $region32: #{tpu_custom_call.1} parent=27 // pred_fallthru
          _
        %s166 = sand.u32 %s56, 1
        %s167 = scalar_lea.sflag [#allocation6], %s166
        %s168 = sand.u32 %s56, 1
        %s169 = smul.addr %s168, 8
        %s170 = scalar_lea.vmem [#allocation5], %s169
        // Predicated region
        $region33: #{tpu_custom_call.1} parent=27 // pred_check
          %p171 = pneg %p69
        $region34: #{tpu_custom_call.1} parent=27 // pred_check_branch
          %173 = sbr.rel (%p171) target = $region36
        $region35: #{tpu_custom_call.1} parent=27 // pred_region
          %174 = dma.done %s167, 128
        $region36: #{tpu_custom_call.1} parent=27 // pred_fallthru
          _
        %s175 = sand.u32 %s30, 1
        %s176 = scalar_lea.sflag [#allocation3], %s175
        %s177 = sand.u32 %s30, 1
        %s178 = smul.addr %s177, 8
        %s179 = scalar_lea.vmem [#allocation2], %s178
        %p180 = pneg %p43
        %p181 = pneg %p40
        %s182 = sand.u32 %s56, 1
        %s183 = scalar_lea.sflag [#allocation6], %s182
        %s184 = sand.u32 %s56, 1
        %s185 = smul.addr %s184, 8
        %s186 = scalar_lea.vmem [#allocation5], %s185
        %p187 = pneg %p69
        %p188 = pneg %p66
        %p189 = pneg %p95
        %p190 = pneg %p92
        %s191 = sand.u32 %s82, 1
        %s192 = scalar_lea.sflag [#allocation4], %s191
        %s193 = sand.u32 %s82, 1
        %s194 = smul.addr %s193, 8
        %s195 = scalar_lea.vmem [#allocation7], %s194
        %v196 = vlaneseq
        %v197 = vand.u32 %v196, 127
        %v198 = vlaneseq
        %v199 = vshrl.u32 %v198, 7
        %vm200 = vcmp.lt.s32.totalorder %v197, 0
        %v201 = vsub.s32 0, %v197
        %v202 = vsel %vm200, %v201, %v197
        %v203 = vshrl.u32 %v202, 4
        %v204 = vand.u32 %v202, 15
        %v205 = vsub.s32 0, %v204
        %v206 = vsel %vm200, %v205, %v204
        %vm207 = vcmp.ne.s32.totalorder %v206, 0
        %vm208 = vcmp.lt.s32.totalorder %v206, 0
        %vm209 = vmand %vm208, %vm207
        %v210 = vadd.s32 %v206, 16
        %v211 = vsel %vm209, %v210, %v206
        %vm212 = vcmp.gt.s32.totalorder %v211, 0
        %vm213 = vcmp.lt.s32.totalorder %v211, 15
        %vm214 = vcmp.lt.s32.totalorder %v199, 0
        %v215 = vsub.s32 0, %v199
        %v216 = vsel %vm214, %v215, %v199
        %v217 = vshrl.u32 %v216, 1
        %v218 = vand.u32 %v216, 1
        %v219 = vsub.s32 0, %v218
        %v220 = vsel %vm214, %v219, %v218
        %vm221 = vcmp.ne.s32.totalorder %v220, 0
        %vm222 = vcmp.lt.s32.totalorder %v220, 0
        %vm223 = vmand %vm222, %vm221
        %v224 = vadd.s32 %v220, 2
        %v225 = vsel %vm223, %v224, %v220
        %vm226 = vcmp.eq.s32.totalorder %v225, 0
        %vm227 = vcmp.lt.s32.totalorder %v197, 16
        %vm228 = vmand %vm226, %vm227
        %vm229 = vmxor %vm228, 1
        %vm230 = vcmp.eq.s32.totalorder %v225, 1
        %vm231 = vcmp.ge.s32.totalorder %v197, 112
        %vm232 = vmand %vm230, %vm231
        %vm233 = vmxor %vm232, 1
        %v234 = vld [vmem:[%s161] sm:$0xff]
        %v235 = vld [vmem:[%s170] sm:$0xff]
        %v236 = vrot.slane %v234, 4
        %v237 = vadd.f32 %v234, %v236
        %v238 = vrot.slane %v237, 2
        %v239 = vadd.f32 %v237, %v238
        %v240 = vrot.slane %v239, 1
        %v241 = vadd.f32 %v239, %v240
        %v242 = vadd.f32 %v241, 0.0
        %v243 = vrot.slane %v235, 4
        %v244 = vadd.f32 %v235, %v243
        %v245 = vrot.slane %v244, 2
        %v246 = vadd.f32 %v244, %v245
        %v247 = vrot.slane %v246, 1
        %v248 = vadd.f32 %v246, %v247
        %v249 = vadd.f32 %v248, 0.0
        %v250 = vmul.f32 %v234, %v235
        %v251 = vrot.slane %v250, 4
        %v252 = vadd.f32 %v250, %v251
        %v253 = vrot.slane %v252, 2
        %v254 = vadd.f32 %v252, %v253
        %v255 = vrot.slane %v254, 1
        %v256 = vadd.f32 %v254, %v255
        %v257 = vadd.f32 %v256, 0.0
        %258 = vrot.lane.b32.xlu0 %v234, 112
        %v259 = vpop.permute.xlu0 %258
        %v260 = vrot.slane %v259, 1
        %vm261 = vcmp.lt.s32.totalorder %v197, 112
        %v262 = vsel %vm261, %v259, %v260
        %263 = vrot.lane.b32.xlu0 %v234, 16
        %v264 = vpop.permute.xlu0 %263
        %v265 = vrot.slane %v264, 7
        %vm266 = vcmp.ge.s32.totalorder %v197, 16
        %v267 = vsel %vm266, %v264, %v265
        %v268 = vsel %vm233, %v262, -inf
        %v269 = vsel %vm229, %v267, -inf
        %v270 = vmax.f32 %v268, %v269
        %v271 = vmax.f32 %v234, %v270
        %v272 = vsel %vm233, %v262, inf
        %v273 = vsel %vm229, %v267, inf
        %v274 = vmin.f32 %v272, %v273
        %v275 = vmin.f32 %v234, %v274
        %276 = vrot.lane.b32.xlu0 %v271, 1
        %v277 = vpop.permute.xlu0 %276
        %278 = vrot.lane.b32.xlu0 %v271, 127
        %v279 = vpop.permute.xlu0 %278
        %v280 = vsel %vm212, %v277, -inf
        %v281 = vsel %vm213, %v279, -inf
        %v282 = vmax.f32 %v280, %v281
        %v283 = vmax.f32 %v271, %v282
        %284 = vrot.lane.b32.xlu0 %v275, 1
        %v285 = vpop.permute.xlu0 %284
        %286 = vrot.lane.b32.xlu0 %v275, 127
        %v287 = vpop.permute.xlu0 %286
        %v288 = vsel %vm212, %v285, inf
        %v289 = vsel %vm213, %v287, inf
        %v290 = vmin.f32 %v288, %v289
        %v291 = vmin.f32 %v275, %v290
        %v292 = vadd.f32 %v283, %v291
        %v293 = vrot.slane %v292, 4
        %v294 = vadd.f32 %v292, %v293
        %v295 = vrot.slane %v294, 2
        %v296 = vadd.f32 %v294, %v295
        %v297 = vrot.slane %v296, 1
        %v298 = vadd.f32 %v296, %v297
        %v299 = vadd.f32 %v298, 0.0
        %300 = vrot.lane.b32.xlu0 %v235, 112
        %v301 = vpop.permute.xlu0 %300
        %v302 = vrot.slane %v301, 1
        %v303 = vsel %vm261, %v301, %v302
        %304 = vrot.lane.b32.xlu0 %v235, 16
        %v305 = vpop.permute.xlu0 %304
        %v306 = vrot.slane %v305, 7
        %v307 = vsel %vm266, %v305, %v306
        %v308 = vsel %vm233, %v303, -inf
        %v309 = vsel %vm229, %v307, -inf
        %v310 = vmax.f32 %v308, %v309
        %v311 = vmax.f32 %v235, %v310
        %v312 = vsel %vm233, %v303, inf
        %v313 = vsel %vm229, %v307, inf
        %v314 = vmin.f32 %v312, %v313
        %v315 = vmin.f32 %v235, %v314
        %316 = vrot.lane.b32.xlu0 %v311, 1
        %v317 = vpop.permute.xlu0 %316
        %318 = vrot.lane.b32.xlu0 %v311, 127
        %v319 = vpop.permute.xlu0 %318
        %v320 = vsel %vm212, %v317, -inf
        %v321 = vsel %vm213, %v319, -inf
        %v322 = vmax.f32 %v320, %v321
        %v323 = vmax.f32 %v311, %v322
        %324 = vrot.lane.b32.xlu0 %v315, 1
        %v325 = vpop.permute.xlu0 %324
        %326 = vrot.lane.b32.xlu0 %v315, 127
        %v327 = vpop.permute.xlu0 %326
        %v328 = vsel %vm212, %v325, inf
        %v329 = vsel %vm213, %v327, inf
        %v330 = vmin.f32 %v328, %v329
        %v331 = vmin.f32 %v315, %v330
        %v332 = vadd.f32 %v323, %v331
        %v333 = vrot.slane %v332, 4
        %v334 = vadd.f32 %v332, %v333
        %v335 = vrot.slane %v334, 2
        %v336 = vadd.f32 %v334, %v335
        %v337 = vrot.slane %v336, 1
        %v338 = vadd.f32 %v336, %v337
        %v339 = vadd.f32 %v338, 0.0
        %v340 = vmul.f32 %v292, %v332
        %v341 = vrot.slane %v340, 4
        %v342 = vadd.f32 %v340, %v341
        %v343 = vrot.slane %v342, 2
        %v344 = vadd.f32 %v342, %v343
        %v345 = vrot.slane %v344, 1
        %v346 = vadd.f32 %v344, %v345
        %v347 = vadd.f32 %v346, 0.0
        %vm348 = vcmask 1040384
        %v349 = vsel %vm348, %v242, %v249
        %vm350 = vcmask 1041408
        %v351 = vsel %vm350, %v349, %v257
        %vm352 = vcmask 1042432
        %v353 = vsel %vm352, %v351, %v299
        %vm354 = vcmask 1043456
        %v355 = vsel %vm354, %v353, %v339
        %vm356 = vcmask 1044480
        %v357 = vsel %vm356, %v355, %v347
        %vm358 = vcmask 1045504
        %v359 = vsel %vm358, %v357, 0.0
        %vm360 = vcmask 1046528
        %v361 = vsel %vm360, %v359, 0.0
        %362 = vst [vmem:[%s195] sm:$0xff] %v361
        %s363 = sand.u32 %s82, 1
        %s364 = scalar_lea.sflag [#allocation4], %s363
        %s365 = sand.u32 %s82, 1
        %s366 = smul.addr %s365, 8
        %s367 = scalar_lea.vmem [#allocation7], %s366
        // Predicated region
        $region37: #{tpu_custom_call.1} parent=27 // pred_check
          %p368 = pneg %p92
        $region38: #{tpu_custom_call.1} parent=27 // pred_check_branch
          %370 = sbr.rel (%p368) target = $region40
        $region39: #{tpu_custom_call.1} parent=27 // pred_region
          %s372 = ssub.s32 128, 128
          %373 = vsyncadd %s364, %s372
          %s374 = smul.addr %s22, 128
          %s375 = scalar_lea.hbm %s2, %s374
          %s377 = sshll.u32 %s367, 4
          %s378 = int_to_ptr.vmem [resolvable:$true] %s377
          %380 = dma.vmem_to_hbm [thread:$0]  %s378, 128, %s375, %s364
        $region40: #{tpu_custom_call.1} parent=27 // pred_fallthru
          _
      $region28: #{tpu_custom_call.1} parent=5 // pred_fallthru
        _
      %p381 = scmp.le.s32.totalorder 2, %s17
      // Predicated region
      $region41: #{tpu_custom_call.1} parent=5 // pred_check
        %p382 = pneg %p381
      $region42: #{tpu_custom_call.1} parent=5 // pred_check_branch
        %384 = sbr.rel (%p382) target = $region44
      $region43: #{tpu_custom_call.1} parent=5 // pred_region
        %s385 = ssub.s32 %s17, 2
        // Predicated region
        $region45: #{tpu_custom_call.1} parent=43 // pred_check
          %p386 = pneg %p98
        $region46: #{tpu_custom_call.1} parent=43 // pred_check_branch
          %388 = sbr.rel (%p386) target = $region48
        $region47: #{tpu_custom_call.1} parent=43 // pred_region
          %s389 = sand.u32 %s83, 1
          %s390 = scalar_lea.sflag [#allocation4], %s389
          %s391 = sand.u32 %s83, 1
          %s392 = smul.addr %s391, 8
          %s393 = scalar_lea.vmem [#allocation7], %s392
          %394 = dma.done %s390, 128
        $region48: #{tpu_custom_call.1} parent=43 // pred_fallthru
          _
      $region44: #{tpu_custom_call.1} parent=5 // pred_fallthru
        _
    $region6: #{tpu_custom_call.1} parent=1 // loop_footer
      %s21 = sadd.s32 1, %s17
    $region7: #{tpu_custom_call.1} parent=1 // loop_footer_branch
      %16 = sbr.rel target = $region3
    $region8: #{tpu_custom_call.1} parent=1 // loop_exit
      _
    %395 = vsyncpa [#allocation3], 1
    %s396 = scalar_lea.sflag [#allocation3], 1
    %397 = vsyncpa %s396, 1
    %398 = vsyncpa [#allocation6], 1
    %s399 = scalar_lea.sflag [#allocation6], 1
    %400 = vsyncpa %s399, 1
    %401 = vsyncpa [#allocation4], 1
    %s402 = scalar_lea.sflag [#allocation4], 1
    %403 = vsyncpa %s402, 1

</llo_original>
